<compile_context>
chip_gen: v7x
topology: tpu7x:2x2x1
jax: 0.10.0
libtpu: 0.0.40
codegen_flags: <defaults>
</compile_context>

<pallas_src>
import functools

import jax
import jax.numpy as jnp
from jax.experimental import pallas as pl
from jax.experimental.pallas import tpu as pltpu


def _round_up(a, b):
    return (a + b - 1) // b * b


# -----------------------------------------------------------------------------
# Kernel 1: noisy top-k router, tiled over token tiles.
# -----------------------------------------------------------------------------
def _router_kernel(top_k, x_ref, wr_ref, br_ref, wn_ref, bn_ref, rnd_ref,
                   gate_ref, gate_cols_ref):
    x = x_ref[...]                                                   # (T, D) f32
    # Router matmuls kept in f32: tiny (D x E), and they decide discrete routing.
    logits = jnp.dot(x, wr_ref[...],
                     preferred_element_type=jnp.float32) + br_ref[...]   # (T, E)
    nlog = jnp.dot(x, wn_ref[...],
                   preferred_element_type=jnp.float32) + bn_ref[...]     # (T, E)

    # softplus(z) = max(z, 0) + log1p(exp(-|z|))   (numerically stable)
    softplus = jnp.maximum(nlog, 0.0) + jnp.log1p(jnp.exp(-jnp.abs(nlog)))
    noisy = logits + rnd_ref[...] * softplus                             # (T, E)

    # ---- exact top-k mask: iterative argmax, lowest-index tie-break ----
    neg_inf = jnp.float32(-jnp.inf)
    n_exp = noisy.shape[-1]
    lane = jax.lax.broadcasted_iota(jnp.int32, noisy.shape, 1)           # (T, E)
    work = noisy
    mask = jnp.zeros(noisy.shape, dtype=jnp.bool_)
    for _ in range(top_k):                      # top_k is a small static int
        cur_max = jnp.max(work, axis=-1, keepdims=True)
        is_max = work == cur_max
        first = jnp.min(jnp.where(is_max, lane, n_exp), axis=-1, keepdims=True)
        sel = lane == first                     # exactly one expert per row
        mask = jnp.logical_or(mask, sel)
        work = jnp.where(sel, neg_inf, work)

    # ---- sparse softmax: softmax over selected logits, exact 0 elsewhere ----
    masked = jnp.where(mask, noisy, neg_inf)
    row_max = jnp.max(masked, axis=-1, keepdims=True)   # global row max (finite)
    num = jnp.where(mask, jnp.exp(noisy - row_max), 0.0)
    denom = jnp.sum(num, axis=-1, keepdims=True)
    gate = num / denom                          # exact division (gate may feed
    gate_ref[...] = gate                        # load-balancing losses)

    # Per-expert (E, T, 1) layout emitted directly (static column slices), so
    # the host needs no transpose / extra HBM round trip between the two calls.
    for e_idx in range(n_exp):                  # n_exp is small and static
        gate_cols_ref[e_idx, :, :] = gate[:, e_idx:e_idx + 1]


# -----------------------------------------------------------------------------
# Kernel 2: expert MLPs. grid = (token_tiles, E, H_chunks); output tile is a
# resident f32 accumulator across the inner (expert, H-chunk) axes. flags_ref
# is a scalar-prefetched SMEM (n_t, E) int32 table: 1 iff expert e received any
# token in tile t.
# -----------------------------------------------------------------------------
def _moe_kernel(flags_ref, x_ref, g_ref, w1_ref, b1_ref, w2_ref, b2_ref,
                out_ref):
    t = pl.program_id(0)
    e = pl.program_id(1)
    h = pl.program_id(2)
    routed = flags_ref[t, e] != 0
    is_first = (e == 0) & (h == 0)

    # Keep the accumulator defined even if expert 0 got no tokens in this tile.
    @pl.when(is_first & jnp.logical_not(routed))
    def _():
        out_ref[...] = jnp.zeros_like(out_ref)

    @pl.when(routed)
    def _():
        g = g_ref[0]                                                # (T, 1) f32
        x = x_ref[...]                                              # (T, D) bf16
        hid = jnp.dot(x, w1_ref[0],
                      preferred_element_type=jnp.float32) + b1_ref[0]  # (T, Hc)
        hid = jnp.maximum(hid, 0.0)                                 # ReLU, f32
        # Fold the gate into the hidden activations: (g*hid) @ W2 == g*(hid@W2)
        # -> no per-H-chunk (T, D) gate multiply on the combine path.
        hid = (g * hid).astype(jnp.bfloat16)
        y = jnp.dot(hid, w2_ref[0],
                    preferred_element_type=jnp.float32)             # (T, D) f32

        @pl.when(h == 0)
        def _():
            contrib = y + g * b2_ref[0]         # second-layer bias once/expert

            @pl.when(e == 0)
            def _():
                out_ref[...] = contrib          # first expert writes directly

            @pl.when(e > 0)
            def _():
                out_ref[...] += contrib

        @pl.when(h > 0)
        def _():
            out_ref[...] += y


# -----------------------------------------------------------------------------
# One-time parameter preparation (hoisted out of the forward pass): bf16 expert
# weights + H padded to a multiple of 128 (zero padding is exact: relu(0)=0 and
# padded W2 rows are zero).
# -----------------------------------------------------------------------------
def prepare_moe_params(params):
    H = params["w1"].shape[2]
    H_pad = max(_round_up(H, 128), 128)
    w1 = params["w1"].astype(jnp.bfloat16)
    w2 = params["w2"].astype(jnp.bfloat16)
    b1 = params["b1"]
    if H_pad != H:
        w1 = jnp.pad(w1, ((0, 0), (0, 0), (0, H_pad - H)))
        b1 = jnp.pad(b1, ((0, 0), (0, 0), (0, H_pad - H)))
        w2 = jnp.pad(w2, ((0, 0), (0, H_pad - H), (0, 0)))
    return {"wr": params["wr"], "br": params["br"],
            "wn": params["wn"], "bn": params["bn"],
            "w1": w1, "b1": b1, "w2": w2, "b2": params["b2"]}


# -----------------------------------------------------------------------------
# Wrapper
# -----------------------------------------------------------------------------
def sparse_moe_forward(x, params, noise, top_k):
    """x: (B, T, D) f32, noise: (B, T, E) f32, params from prepare_moe_params.

    Returns ((B, T, D) f32 output, (B*T, E) f32 gate)."""
    B, T, D = x.shape
    E = params["wr"].shape[1]
    H = params["w1"].shape[2]          # already padded to a multiple of 128
    Ttot = B * T

    # Token tile: 512 once there is enough work (per-tile weight stream is
    # fixed, so intensity ~ t_tile FLOP/byte); multiple of 16 for bf16 sublane
    # packing; >= 2 tiles when possible so the "parallel" token axis can split
    # across v7x's two TensorCores.
    if Ttot >= 2 * 512:
        t_tile = 512
    elif Ttot >= 2 * 256:
        t_tile = 256
    else:
        t_tile = _round_up(min(Ttot, 256), 16)
    t_pad = _round_up(Ttot, t_tile)
    n_t = t_pad // t_tile

    # H chunk: 512 preferred (256-deep MXU wants contraction >= 256); H is a
    # multiple of 128 so one of these always divides.
    for cand in (512, 256, 128):
        if H % cand == 0:
            h_tile = cand
            break
    n_h = H // h_tile

    x_flat = x.reshape(Ttot, D)
    noise_flat = noise.reshape(Ttot, E)
    if t_pad != Ttot:
        x_flat = jnp.pad(x_flat, ((0, t_pad - Ttot), (0, 0)))
        noise_flat = jnp.pad(noise_flat, ((0, t_pad - Ttot), (0, 0)))

    # ---------------- router kernel: grid over token tiles ----------------
    gate, gate_cols = pl.pallas_call(
        functools.partial(_router_kernel, top_k),
        out_shape=(jax.ShapeDtypeStruct((t_pad, E), jnp.float32),
                   jax.ShapeDtypeStruct((E, t_pad, 1), jnp.float32)),
        grid_spec=pltpu.PrefetchScalarGridSpec(
            num_scalar_prefetch=0,
            grid=(n_t,),
            in_specs=[
                pl.BlockSpec((t_tile, D), lambda t: (t, 0)),   # x
                pl.BlockSpec((D, E), lambda t: (0, 0)),        # Wr (broadcast)
                pl.BlockSpec((1, E), lambda t: (0, 0)),        # br
                pl.BlockSpec((D, E), lambda t: (0, 0)),        # Wn
                pl.BlockSpec((1, E), lambda t: (0, 0)),        # bn
                pl.BlockSpec((t_tile, E), lambda t: (t, 0)),   # noise
            ],
            out_specs=(
                pl.BlockSpec((t_tile, E), lambda t: (t, 0)),       # gate
                pl.BlockSpec((E, t_tile, 1), lambda t: (0, t, 0)),  # gate cols
            ),
        ),
        compiler_params=pltpu.CompilerParams(
            dimension_semantics=("parallel",)),
    )(x_flat, params["wr"], params["br"], params["wn"], params["bn"],
      noise_flat)

    # Per-(tile, expert) "has any routed token" flags -> SMEM scalar prefetch.
    flags = jnp.any(gate.reshape(n_t, t_tile, E) > 0.0, axis=1).astype(jnp.int32)

    # Activations in bf16 for the MXU-heavy expert matmuls (weights were cast
    # once in prepare_moe_params); f32 biases and f32 accumulation in-kernel.
    x_bf16 = x_flat.astype(jnp.bfloat16)

    # VMEM budget from the real tile footprint (double-buffered pipeline tiles,
    # resident f32 accumulator, temporaries), capped below v7x's 64 MiB VMEM.
    est = (2 * (t_tile * D * 2 + t_tile * 4 + D * h_tile * 2 + h_tile * 4
                + h_tile * D * 2 + D * 4)
           + 2 * t_tile * D * 4
           + t_tile * h_tile * 4 + t_tile * D * 4)
    vmem_limit = int(min(max(3 * est, 32 * 1024 * 1024), 48 * 1024 * 1024))

    # ------------- expert kernel: (token_tiles, E, H_chunks) grid -------------
    out = pl.pallas_call(
        _moe_kernel,
        out_shape=jax.ShapeDtypeStruct((t_pad, D), jnp.float32),
        grid_spec=pltpu.PrefetchScalarGridSpec(
            num_scalar_prefetch=1,   # flags -> SMEM
            grid=(n_t, E, n_h),      # token tiles OUTER, expert/H-chunk INNER
            in_specs=[
                pl.BlockSpec((t_tile, D), lambda t, e, h, fl: (t, 0)),        # x
                pl.BlockSpec((1, t_tile, 1), lambda t, e, h, fl: (e, t, 0)),  # g
                pl.BlockSpec((1, D, h_tile), lambda t, e, h, fl: (e, 0, h)),  # W1
                pl.BlockSpec((1, 1, h_tile), lambda t, e, h, fl: (e, 0, h)),  # b1
                pl.BlockSpec((1, h_tile, D), lambda t, e, h, fl: (e, h, 0)),  # W2
                pl.BlockSpec((1, 1, D), lambda t, e, h, fl: (e, 0, 0)),       # b2
            ],
            out_specs=pl.BlockSpec((t_tile, D), lambda t, e, h, fl: (t, 0)),
        ),
        compiler_params=pltpu.CompilerParams(
            dimension_semantics=("parallel", "arbitrary", "arbitrary"),
            vmem_limit_bytes=vmem_limit),
    )(flags, x_bf16, gate_cols, params["w1"], params["b1"], params["w2"],
      params["b2"])

    return out[:Ttot].reshape(B, T, D), gate[:Ttot]


# -----------------------------------------------------------------------------
# Pure-JAX reference (f32 everywhere, jax.lax.top_k for the router)
# -----------------------------------------------------------------------------
def sparse_moe_reference(x, params, noise, top_k):
    B, T, D = x.shape
    E = params["wr"].shape[1]
    xf = x.reshape(-1, D)
    nf = noise.reshape(-1, E)
    logits = xf @ params["wr"] + params["br"]
    nlog = xf @ params["wn"] + params["bn"]
    noisy = logits + nf * jax.nn.softplus(nlog)
    _, idx = jax.lax.top_k(noisy, top_k)
    mask = jnp.any(jax.nn.one_hot(idx, E, dtype=jnp.bool_), axis=1)
    masked = jnp.where(mask, noisy, -jnp.inf)
    gate = jax.nn.softmax(masked, axis=-1)
    out = jnp.zeros_like(xf)
    for e in range(E):
        h = jnp.maximum(xf @ params["w1"][e] + params["b1"][e][0], 0.0)
        y = h @ params["w2"][e] + params["b2"][e][0]
        out = out + gate[:, e:e + 1] * y
    return out.reshape(B, T, D), gate


# -----------------------------------------------------------------------------
# Deterministic parameter init (PyTorch-like uniform(-1/sqrt(fan_in), ...))
# -----------------------------------------------------------------------------
def init_params(key, n_embed, num_experts):
    D, E, H = n_embed, num_experts, 4 * n_embed
    ks = jax.random.split(key, 8)
    u = lambda k, shape, fan: jax.random.uniform(
        k, shape, jnp.float32, -1.0 / jnp.sqrt(fan), 1.0 / jnp.sqrt(fan))
    return {
        "wr": u(ks[0], (D, E), D), "br": u(ks[1], (1, E), D),
        "wn": u(ks[2], (D, E), D), "bn": u(ks[3], (1, E), D),
        "w1": u(ks[4], (E, D, H), D), "b1": u(ks[5], (E, 1, H), D),
        "w2": u(ks[6], (E, H, D), H), "b2": u(ks[7], (E, 1, D), H),
    }


if __name__ == "__main__":
    n_embed, num_experts, top_k = 32, 4, 2
    B, T = 2, 8

    key = jax.random.PRNGKey(0)
    k_x, k_n, k_p = jax.random.split(key, 3)
    x = jax.random.normal(k_x, (B, T, n_embed), jnp.float32)
    noise = jax.random.normal(k_n, (B, T, num_experts), jnp.float32)
    params = init_params(k_p, n_embed, num_experts)
    moe_params = prepare_moe_params(params)   # one-time bf16 cast / H padding

    out, gate = sparse_moe_forward(x, moe_params, noise, top_k)
    out = jax.block_until_ready(out)

    ref_out, ref_gate = sparse_moe_reference(x, params, noise, top_k)
    # Gate: f32 router, exact division -> tight tolerance.
    assert jnp.allclose(gate, ref_gate, atol=2e-3, rtol=2e-3)
    # Output: bf16 MXU matmuls with f32 accumulation vs f32 reference.
    assert jnp.allclose(out, ref_out, atol=5e-2, rtol=5e-2)

    print("KERNEL_OK")
</pallas_src>

<mosaic_0001>
module attributes {stable_mosaic.version = 11 : i64} {
  func.func @_router_kernel(%arg0: i32, %arg1: memref<16x32xf32, #tpu.memory_space<vmem>>, %arg2: memref<32x4xf32, #tpu.memory_space<vmem>>, %arg3: memref<1x4xf32, #tpu.memory_space<vmem>>, %arg4: memref<32x4xf32, #tpu.memory_space<vmem>>, %arg5: memref<1x4xf32, #tpu.memory_space<vmem>>, %arg6: memref<16x4xf32, #tpu.memory_space<vmem>>, %arg7: memref<16x4xf32, #tpu.memory_space<vmem>>, %arg8: memref<4x16x1xf32, #tpu.memory_space<vmem>>) attributes {dimension_semantics = [#tpu.dimension_semantics<parallel>], iteration_bounds = array<i64: 1>, scalar_prefetch = 0 : i64, scratch_operands = 0 : i64, tpu.core_type = #tpu.core_type<tc>, window_params = [{transform_indices = @transform_0, window_bounds = array<i64: 16, 32>}, {pipeline_mode = #tpu.pipeline_mode<synchronous>, transform_indices = @transform_1, window_bounds = array<i64: 32, 4>}, {pipeline_mode = #tpu.pipeline_mode<synchronous>, transform_indices = @transform_2, window_bounds = array<i64: 1, 4>}, {pipeline_mode = #tpu.pipeline_mode<synchronous>, transform_indices = @transform_3, window_bounds = array<i64: 32, 4>}, {pipeline_mode = #tpu.pipeline_mode<synchronous>, transform_indices = @transform_4, window_bounds = array<i64: 1, 4>}, {transform_indices = @transform_5, window_bounds = array<i64: 16, 4>}, {transform_indices = @transform_6, window_bounds = array<i64: 16, 4>}, {transform_indices = @transform_7, window_bounds = array<i64: 4, 16, 1>}]} {
    %c0 = arith.constant 0 : index
    %c0_0 = arith.constant 0 : index
    %0 = vector.load %arg1[%c0, %c0_0] : memref<16x32xf32, #tpu.memory_space<vmem>>, vector<16x32xf32>
    %c0_1 = arith.constant 0 : index
    %c0_2 = arith.constant 0 : index
    %1 = vector.load %arg2[%c0_1, %c0_2] : memref<32x4xf32, #tpu.memory_space<vmem>>, vector<32x4xf32>
    %cst = arith.constant dense<0.000000e+00> : vector<16x4xf32>
    %2 = tpu.matmul %0, %1, %cst {dimension_numbers = #tpu.dot_dimension_numbers<[1], [0], [0], [1], [0, 0, 1, 1], [], []>} : vector<16x32xf32>, vector<32x4xf32>, vector<16x4xf32> -> vector<16x4xf32>
    %c0_3 = arith.constant 0 : index
    %c0_4 = arith.constant 0 : index
    %3 = vector.load %arg3[%c0_3, %c0_4] : memref<1x4xf32, #tpu.memory_space<vmem>>, vector<1x4xf32>
    %4 = vector.broadcast %3 : vector<1x4xf32> to vector<16x4xf32>
    %5 = arith.addf %2, %4 : vector<16x4xf32>
    %c0_5 = arith.constant 0 : index
    %c0_6 = arith.constant 0 : index
    %6 = vector.load %arg4[%c0_5, %c0_6] : memref<32x4xf32, #tpu.memory_space<vmem>>, vector<32x4xf32>
    %cst_7 = arith.constant dense<0.000000e+00> : vector<16x4xf32>
    %7 = tpu.matmul %0, %6, %cst_7 {dimension_numbers = #tpu.dot_dimension_numbers<[1], [0], [0], [1], [0, 0, 1, 1], [], []>} : vector<16x32xf32>, vector<32x4xf32>, vector<16x4xf32> -> vector<16x4xf32>
    %c0_8 = arith.constant 0 : index
    %c0_9 = arith.constant 0 : index
    %8 = vector.load %arg5[%c0_8, %c0_9] : memref<1x4xf32, #tpu.memory_space<vmem>>, vector<1x4xf32>
    %9 = vector.broadcast %8 : vector<1x4xf32> to vector<16x4xf32>
    %10 = arith.addf %7, %9 : vector<16x4xf32>
    %cst_10 = arith.constant 0.000000e+00 : f32
    %11 = vector.broadcast %cst_10 : f32 to vector<16x4xf32>
    %12 = arith.maximumf %10, %11 : vector<16x4xf32>
    %13 = math.absf %10 : vector<16x4xf32>
    %cst_11 = arith.constant 0.000000e+00 : f32
    %14 = vector.broadcast %cst_11 : f32 to vector<16x4xf32>
    %15 = arith.subf %14, %13 : vector<16x4xf32>
    %16 = math.exp %15 : vector<16x4xf32>
    %17 = math.log1p %16 : vector<16x4xf32>
    %18 = arith.addf %12, %17 : vector<16x4xf32>
    %c0_12 = arith.constant 0 : index
    %c0_13 = arith.constant 0 : index
    %19 = vector.load %arg6[%c0_12, %c0_13] : memref<16x4xf32, #tpu.memory_space<vmem>>, vector<16x4xf32>
    %20 = arith.mulf %19, %18 : vector<16x4xf32>
    %21 = arith.addf %5, %20 : vector<16x4xf32>
    %22 = tpu.iota {dimensions = array<i32: 1>} : vector<16x4xi32>
    %false = arith.constant false
    %23 = vector.broadcast %false : i1 to vector<16x4xi1>
    %cst_14 = arith.constant dense<0xFF800000> : vector<16xf32>
    %24 = vector.multi_reduction <maximumf>, %21, %cst_14 [1] : vector<16x4xf32> to vector<16xf32>
    %25 = vector.shape_cast %24 : vector<16xf32> to vector<16x1xf32>
    %26 = vector.broadcast %25 : vector<16x1xf32> to vector<16x4xf32>
    %27 = arith.cmpf oeq, %21, %26 : vector<16x4xf32>
    %c4_i32 = arith.constant 4 : i32
    %28 = vector.broadcast %c4_i32 : i32 to vector<16x4xi32>
    %29 = arith.select %27, %22, %28 : vector<16x4xi1>, vector<16x4xi32>
    %cst_15 = arith.constant dense<2147483647> : vector<16xi32>
    %30 = vector.multi_reduction <minsi>, %29, %cst_15 [1] : vector<16x4xi32> to vector<16xi32>
    %31 = vector.shape_cast %30 : vector<16xi32> to vector<16x1xi32>
    %32 = vector.broadcast %31 : vector<16x1xi32> to vector<16x4xi32>
    %33 = arith.cmpi eq, %22, %32 : vector<16x4xi32>
    %34 = arith.ori %23, %33 : vector<16x4xi1>
    %cst_16 = arith.constant 0xFF800000 : f32
    %35 = vector.broadcast %cst_16 : f32 to vector<16x4xf32>
    %36 = arith.select %33, %35, %21 : vector<16x4xi1>, vector<16x4xf32>
    %cst_17 = arith.constant dense<0xFF800000> : vector<16xf32>
    %37 = vector.multi_reduction <maximumf>, %36, %cst_17 [1] : vector<16x4xf32> to vector<16xf32>
    %38 = vector.shape_cast %37 : vector<16xf32> to vector<16x1xf32>
    %39 = vector.broadcast %38 : vector<16x1xf32> to vector<16x4xf32>
    %40 = arith.cmpf oeq, %36, %39 : vector<16x4xf32>
    %c4_i32_18 = arith.constant 4 : i32
    %41 = vector.broadcast %c4_i32_18 : i32 to vector<16x4xi32>
    %42 = arith.select %40, %22, %41 : vector<16x4xi1>, vector<16x4xi32>
    %cst_19 = arith.constant dense<2147483647> : vector<16xi32>
    %43 = vector.multi_reduction <minsi>, %42, %cst_19 [1] : vector<16x4xi32> to vector<16xi32>
    %44 = vector.shape_cast %43 : vector<16xi32> to vector<16x1xi32>
    %45 = vector.broadcast %44 : vector<16x1xi32> to vector<16x4xi32>
    %46 = arith.cmpi eq, %22, %45 : vector<16x4xi32>
    %47 = arith.ori %34, %46 : vector<16x4xi1>
    %cst_20 = arith.constant 0xFF800000 : f32
    %48 = vector.broadcast %cst_20 : f32 to vector<16x4xf32>
    %49 = arith.select %47, %21, %48 : vector<16x4xi1>, vector<16x4xf32>
    %cst_21 = arith.constant dense<0xFF800000> : vector<16xf32>
    %50 = vector.multi_reduction <maximumf>, %49, %cst_21 [1] : vector<16x4xf32> to vector<16xf32>
    %51 = vector.shape_cast %50 : vector<16xf32> to vector<16x1xf32>
    %52 = vector.broadcast %51 : vector<16x1xf32> to vector<16x4xf32>
    %53 = arith.subf %21, %52 : vector<16x4xf32>
    %54 = math.exp %53 : vector<16x4xf32>
    %cst_22 = arith.constant 0.000000e+00 : f32
    %55 = vector.broadcast %cst_22 : f32 to vector<16x4xf32>
    %56 = arith.select %47, %54, %55 : vector<16x4xi1>, vector<16x4xf32>
    %cst_23 = arith.constant dense<0.000000e+00> : vector<16xf32>
    %57 = vector.multi_reduction <add>, %56, %cst_23 [1] : vector<16x4xf32> to vector<16xf32>
    %58 = vector.shape_cast %57 : vector<16xf32> to vector<16x1xf32>
    %59 = vector.broadcast %58 : vector<16x1xf32> to vector<16x4xf32>
    %60 = arith.divf %56, %59 : vector<16x4xf32>
    %c0_24 = arith.constant 0 : index
    %c0_25 = arith.constant 0 : index
    %61 = vector.load %arg7[%c0_24, %c0_25] : memref<16x4xf32, #tpu.memory_space<vmem>>, vector<16x4xf32>
    tpu.vector_store %arg7[%c0_24, %c0_25], %60 {strides = array<i32>} : memref<16x4xf32, #tpu.memory_space<vmem>>, vector<16x4xf32>,
    %62 = vector.extract_strided_slice %60 {offsets = [0, 0], sizes = [16, 1], strides = [1, 1]} : vector<16x4xf32> to vector<16x1xf32>
    %c0_26 = arith.constant 0 : index
    %c0_27 = arith.constant 0 : index
    %c0_28 = arith.constant 0 : index
    %63 = vector.load %arg8[%c0_26, %c0_27, %c0_28] : memref<4x16x1xf32, #tpu.memory_space<vmem>>, vector<1x16x1xf32>
    %64 = vector.shape_cast %63 : vector<1x16x1xf32> to vector<16x1xf32>
    %65 = vector.shape_cast %62 : vector<16x1xf32> to vector<1x16x1xf32>
    tpu.vector_store %arg8[%c0_26, %c0_27, %c0_28], %65 {strides = array<i32>} : memref<4x16x1xf32, #tpu.memory_space<vmem>>, vector<1x16x1xf32>,
    %66 = vector.extract_strided_slice %60 {offsets = [0, 1], sizes = [16, 1], strides = [1, 1]} : vector<16x4xf32> to vector<16x1xf32>
    %c1 = arith.constant 1 : index
    %c0_29 = arith.constant 0 : index
    %c0_30 = arith.constant 0 : index
    %67 = vector.load %arg8[%c1, %c0_29, %c0_30] : memref<4x16x1xf32, #tpu.memory_space<vmem>>, vector<1x16x1xf32>
    %68 = vector.shape_cast %67 : vector<1x16x1xf32> to vector<16x1xf32>
    %69 = vector.shape_cast %66 : vector<16x1xf32> to vector<1x16x1xf32>
    tpu.vector_store %arg8[%c1, %c0_29, %c0_30], %69 {strides = array<i32>} : memref<4x16x1xf32, #tpu.memory_space<vmem>>, vector<1x16x1xf32>,
    %70 = vector.extract_strided_slice %60 {offsets = [0, 2], sizes = [16, 1], strides = [1, 1]} : vector<16x4xf32> to vector<16x1xf32>
    %c2 = arith.constant 2 : index
    %c0_31 = arith.constant 0 : index
    %c0_32 = arith.constant 0 : index
    %71 = vector.load %arg8[%c2, %c0_31, %c0_32] : memref<4x16x1xf32, #tpu.memory_space<vmem>>, vector<1x16x1xf32>
    %72 = vector.shape_cast %71 : vector<1x16x1xf32> to vector<16x1xf32>
    %73 = vector.shape_cast %70 : vector<16x1xf32> to vector<1x16x1xf32>
    tpu.vector_store %arg8[%c2, %c0_31, %c0_32], %73 {strides = array<i32>} : memref<4x16x1xf32, #tpu.memory_space<vmem>>, vector<1x16x1xf32>,
    %74 = vector.extract_strided_slice %60 {offsets = [0, 3], sizes = [16, 1], strides = [1, 1]} : vector<16x4xf32> to vector<16x1xf32>
    %c3 = arith.constant 3 : index
    %c0_33 = arith.constant 0 : index
    %c0_34 = arith.constant 0 : index
    %75 = vector.load %arg8[%c3, %c0_33, %c0_34] : memref<4x16x1xf32, #tpu.memory_space<vmem>>, vector<1x16x1xf32>
    %76 = vector.shape_cast %75 : vector<1x16x1xf32> to vector<16x1xf32>
    %77 = vector.shape_cast %74 : vector<16x1xf32> to vector<1x16x1xf32>
    tpu.vector_store %arg8[%c3, %c0_33, %c0_34], %77 {strides = array<i32>} : memref<4x16x1xf32, #tpu.memory_space<vmem>>, vector<1x16x1xf32>,
    return
  }
  func.func @transform_0(%arg0: i32) -> (i32, i32) {
    %c0_i32 = arith.constant 0 : i32
    %c0_i32_0 = arith.constant 0 : i32
    return %arg0, %c0_i32 : i32, i32
  }
  func.func @transform_1(%arg0: i32) -> (i32, i32) {
    %c0_i32 = arith.constant 0 : i32
    %c0_i32_0 = arith.constant 0 : i32
    %c0_i32_1 = arith.constant 0 : i32
    return %c0_i32, %c0_i32_0 : i32, i32
  }
  func.func @transform_2(%arg0: i32) -> (i32, i32) {
    %c0_i32 = arith.constant 0 : i32
    %c0_i32_0 = arith.constant 0 : i32
    %c0_i32_1 = arith.constant 0 : i32
    return %c0_i32, %c0_i32_0 : i32, i32
  }
  func.func @transform_3(%arg0: i32) -> (i32, i32) {
    %c0_i32 = arith.constant 0 : i32
    %c0_i32_0 = arith.constant 0 : i32
    %c0_i32_1 = arith.constant 0 : i32
    return %c0_i32, %c0_i32_0 : i32, i32
  }
  func.func @transform_4(%arg0: i32) -> (i32, i32) {
    %c0_i32 = arith.constant 0 : i32
    %c0_i32_0 = arith.constant 0 : i32
    %c0_i32_1 = arith.constant 0 : i32
    return %c0_i32, %c0_i32_0 : i32, i32
  }
  func.func @transform_5(%arg0: i32) -> (i32, i32) {
    %c0_i32 = arith.constant 0 : i32
    %c0_i32_0 = arith.constant 0 : i32
    return %arg0, %c0_i32 : i32, i32
  }
  func.func @transform_6(%arg0: i32) -> (i32, i32) {
    %c0_i32 = arith.constant 0 : i32
    %c0_i32_0 = arith.constant 0 : i32
    return %arg0, %c0_i32 : i32, i32
  }
  func.func @transform_7(%arg0: i32) -> (i32, i32, i32) {
    %c0_i32 = arith.constant 0 : i32
    %c0_i32_0 = arith.constant 0 : i32
    %c0_i32_1 = arith.constant 0 : i32
    return %c0_i32, %arg0, %c0_i32_0 : i32, i32, i32
  }
}

</mosaic_0001>

<llo_original>
// kernel: tpu_custom_call.1
$region0: #{tpu_custom_call.1}
  #allocation0 [shape = 'u32[]', space=smem, size = 0x4, offset = 0x4, fixed_abs, tag = 'smem constant byte address 0x4 - core index']
  #allocation1 [shape = 'u32[144,128]{1,0:T(1,128)}', space=vmem, size = 0x12000, scoped, tag = 'internal scratch']
  %s0 = inlined_call_operand.vmem [shape: f32[16,32], index: 0, kind: input, shape index: {}]
  %s1 = inlined_call_operand.vmem [shape: f32[32,4], index: 1, kind: input, shape index: {}]
  %s2 = inlined_call_operand.vmem [shape: f32[1,4], index: 2, kind: input, shape index: {}]
  %s3 = inlined_call_operand.vmem [shape: f32[32,4], index: 3, kind: input, shape index: {}]
  %s4 = inlined_call_operand.vmem [shape: f32[1,4], index: 4, kind: input, shape index: {}]
  %s5 = inlined_call_operand.vmem [shape: f32[16,4], index: 5, kind: input, shape index: {}]
  %s6 = inlined_call_operand.vmem [shape: f32[16,4], index: 6, kind: output, shape index: {0}]
  %s7 = inlined_call_operand.vmem [shape: f32[4,16,1], index: 7, kind: output, shape index: {1}]
  %8 = xla_tuple %s6, %s7
  %s9 = sld [smem:[#allocation0]]
  $region42: #{tpu_custom_call.1} parent=0
    _
  %s11 = ssub.s32 1, %s9
  %s12 = scalar_select 0, %s11, %s9
  // Predicated region
  $region2: #{tpu_custom_call.1} parent=0 // pred_check
    _
  $region3: #{tpu_custom_call.1} parent=0 // pred_check_branch
    %14 = sbr.rel (0) target = $region5
  $region4: #{tpu_custom_call.1} parent=0 // pred_region
    _
  $region5: #{tpu_custom_call.1} parent=0 // pred_fallthru
    _
  // Predicated region
  $region6: #{tpu_custom_call.1} parent=0 // pred_check
    _
  $region7: #{tpu_custom_call.1} parent=0 // pred_check_branch
    %16 = sbr.rel (0) target = $region9
  $region8: #{tpu_custom_call.1} parent=0 // pred_region
    _
  $region9: #{tpu_custom_call.1} parent=0 // pred_fallthru
    _
  // Predicated region
  $region10: #{tpu_custom_call.1} parent=0 // pred_check
    _
  $region11: #{tpu_custom_call.1} parent=0 // pred_check_branch
    %18 = sbr.rel (0) target = $region13
  $region12: #{tpu_custom_call.1} parent=0 // pred_region
    _
  $region13: #{tpu_custom_call.1} parent=0 // pred_fallthru
    _
  // Predicated region
  $region14: #{tpu_custom_call.1} parent=0 // pred_check
    _
  $region15: #{tpu_custom_call.1} parent=0 // pred_check_branch
    %20 = sbr.rel (0) target = $region17
  $region16: #{tpu_custom_call.1} parent=0 // pred_region
    _
  $region17: #{tpu_custom_call.1} parent=0 // pred_fallthru
    _
  // Predicated region
  $region18: #{tpu_custom_call.1} parent=0 // pred_check
    _
  $region19: #{tpu_custom_call.1} parent=0 // pred_check_branch
    %22 = sbr.rel (0) target = $region21
  $region20: #{tpu_custom_call.1} parent=0 // pred_region
    _
  $region21: #{tpu_custom_call.1} parent=0 // pred_fallthru
    _
  // Predicated region
  $region22: #{tpu_custom_call.1} parent=0 // pred_check
    _
  $region23: #{tpu_custom_call.1} parent=0 // pred_check_branch
    %24 = sbr.rel (0) target = $region25
  $region24: #{tpu_custom_call.1} parent=0 // pred_region
    _
  $region25: #{tpu_custom_call.1} parent=0 // pred_fallthru
    _
  %v25 = vld [vmem:[%s0] sm:$0xff]
  %v26 = vld [vmem:[%s0 + $0x8] sm:$0xff]
  %v27 = vld [vmem:[%s1] sm:$0xff]
  %v28 = vld [vmem:[%s1 + $0x8] sm:$0xff]
  %v29 = vld [vmem:[%s1 + $0x10] sm:$0xff]
  %v30 = vld [vmem:[%s1 + $0x18] sm:$0xff]
  %v31 = vld [vmem:[%s2] sm:$0x1]
  %v33 = vlaneseq
  %v34 = vshrl.u32 %v33, 7
  %v35 = vsub.s32 0, %v34
  %v36 = vrot.slane %v31, %v35
  %vm38 = vcmask 261120
  %v40 = vsel %vm38, %v25, 0
  %v43 = vsel %vm38, %v26, 0
  %45 = vmatprep.subr.mxu0 0.0
  %46 = vmatpush1.msra.mxu0 %v27
  %47 = vmatprep.subr.mxu0 0.0
  %48 = vmatpush1.msra.mxu0 %v28
  %49 = vmatprep.subr.mxu0 0.0
  %50 = vmatpush1.msra.mxu0 %v29
  %51 = vmatprep.subr.mxu0 0.0
  %52 = vmatpush1.msra.mxu0 %v30
  %53 = vmatprep.subr.mxu0 0.0
  %54 = vmatpush1.msra.mxu0 0.0
  %55 = vmatprep.subr.mxu0 0.0
  %56 = vmatpush1.msra.mxu0 0.0
  %57 = vmatprep.subr.mxu0 0.0
  %58 = vmatpush1.msra.mxu0 0.0
  %59 = vmatprep.subr.mxu0 0.0
  %60 = vmatpush1.msra.mxu0 0.0
  %61 = vmatprep.subr.mxu0 0.0
  %62 = vmatpush1.msra.mxu0 0.0
  %63 = vmatprep.subr.mxu0 0.0
  %64 = vmatpush1.msra.mxu0 0.0
  %65 = vmatprep.subr.mxu0 0.0
  %66 = vmatpush1.msra.mxu0 0.0
  %67 = vmatprep.subr.mxu0 0.0
  %68 = vmatpush1.msra.mxu0 0.0
  %69 = vmatprep.subr.mxu0 0.0
  %70 = vmatpush1.msra.mxu0 0.0
  %71 = vmatprep.subr.mxu0 0.0
  %72 = vmatpush1.msra.mxu0 0.0
  %73 = vmatprep.subr.mxu0 0.0
  %74 = vmatpush1.msra.mxu0 0.0
  %75 = vmatprep.subr.mxu0 0.0
  %76 = vmatpush1.msra.mxu0 0.0
  %77 = vmatprep.subr.mxu0 0.0
  %78 = vmatpush1.msra.mxu0 0.0
  %79 = vmatprep.subr.mxu0 0.0
  %80 = vmatpush1.msra.mxu0 0.0
  %81 = vmatprep.subr.mxu0 0.0
  %82 = vmatpush1.msra.mxu0 0.0
  %83 = vmatprep.subr.mxu0 0.0
  %84 = vmatpush1.msra.mxu0 0.0
  %85 = vmatprep.subr.mxu0 0.0
  %86 = vmatpush1.msra.mxu0 0.0
  %87 = vmatprep.subr.mxu0 0.0
  %88 = vmatpush1.msra.mxu0 0.0
  %89 = vmatprep.subr.mxu0 0.0
  %90 = vmatpush1.msra.mxu0 0.0
  %91 = vmatprep.subr.mxu0 0.0
  %92 = vmatpush1.msra.mxu0 0.0
  %93 = vmatprep.subr.mxu0 0.0
  %94 = vmatpush1.msra.mxu0 0.0
  %95 = vmatprep.subr.mxu0 0.0
  %96 = vmatpush1.msra.mxu0 0.0
  %97 = vmatprep.subr.mxu0 0.0
  %98 = vmatpush1.msra.mxu0 0.0
  %99 = vmatprep.subr.mxu0 0.0
  %100 = vmatpush1.msra.mxu0 0.0
  %101 = vmatprep.subr.mxu0 0.0
  %102 = vmatpush1.msra.mxu0 0.0
  %103 = vmatprep.subr.mxu0 0.0
  %104 = vmatpush1.msra.mxu0 0.0
  %105 = vmatprep.subr.mxu0 0.0
  %106 = vmatpush1.msra.mxu0 0.0
  %107 = vmatprep.subr.mxu0 0.0
  %108 = vmatpush1.msra.mxu0 0.0
  %109 = vmatprep.mubr.f32.mxu0 0.0
  %110 = vmatmul.mubr.f32.gmra.mrb[0].mxu0 %v40
  %v111 = vpop.f32.mrb[0].mxu0
  %v112 = vadd.f32 %v36, %v111
  %v113 = vpop.f32.mrb[0].mxu0
  %114 = vmatprep.mubr.f32.mxu0 0.0
  %115 = vmatmul.mubr.f32.gmra.mrb[0].mxu0 %v43
  %v116 = vpop.f32.mrb[0].mxu0
  %v117 = vadd.f32 %v36, %v116
  %v118 = vpop.f32.mrb[0].mxu0
  %119 = vdwg.mxu0
  %v120 = vld [vmem:[%s3] sm:$0xff]
  %v121 = vld [vmem:[%s3 + $0x8] sm:$0xff]
  %v122 = vld [vmem:[%s3 + $0x10] sm:$0xff]
  %v123 = vld [vmem:[%s3 + $0x18] sm:$0xff]
  %v124 = vld [vmem:[%s4] sm:$0x1]
  %v126 = vlaneseq
  %v127 = vshrl.u32 %v126, 7
  %v128 = vsub.s32 0, %v127
  %v129 = vrot.slane %v124, %v128
  %131 = vmatprep.subr.mxu0 0.0
  %132 = vmatpush1.msra.mxu0 %v120
  %133 = vmatprep.subr.mxu0 0.0
  %134 = vmatpush1.msra.mxu0 %v121
  %135 = vmatprep.subr.mxu0 0.0
  %136 = vmatpush1.msra.mxu0 %v122
  %137 = vmatprep.subr.mxu0 0.0
  %138 = vmatpush1.msra.mxu0 %v123
  %139 = vmatprep.subr.mxu0 0.0
  %140 = vmatpush1.msra.mxu0 0.0
  %141 = vmatprep.subr.mxu0 0.0
  %142 = vmatpush1.msra.mxu0 0.0
  %143 = vmatprep.subr.mxu0 0.0
  %144 = vmatpush1.msra.mxu0 0.0
  %145 = vmatprep.subr.mxu0 0.0
  %146 = vmatpush1.msra.mxu0 0.0
  %147 = vmatprep.subr.mxu0 0.0
  %148 = vmatpush1.msra.mxu0 0.0
  %149 = vmatprep.subr.mxu0 0.0
  %150 = vmatpush1.msra.mxu0 0.0
  %151 = vmatprep.subr.mxu0 0.0
  %152 = vmatpush1.msra.mxu0 0.0
  %153 = vmatprep.subr.mxu0 0.0
  %154 = vmatpush1.msra.mxu0 0.0
  %155 = vmatprep.subr.mxu0 0.0
  %156 = vmatpush1.msra.mxu0 0.0
  %157 = vmatprep.subr.mxu0 0.0
  %158 = vmatpush1.msra.mxu0 0.0
  %159 = vmatprep.subr.mxu0 0.0
  %160 = vmatpush1.msra.mxu0 0.0
  %161 = vmatprep.subr.mxu0 0.0
  %162 = vmatpush1.msra.mxu0 0.0
  %163 = vmatprep.subr.mxu0 0.0
  %164 = vmatpush1.msra.mxu0 0.0
  %165 = vmatprep.subr.mxu0 0.0
  %166 = vmatpush1.msra.mxu0 0.0
  %167 = vmatprep.subr.mxu0 0.0
  %168 = vmatpush1.msra.mxu0 0.0
  %169 = vmatprep.subr.mxu0 0.0
  %170 = vmatpush1.msra.mxu0 0.0
  %171 = vmatprep.subr.mxu0 0.0
  %172 = vmatpush1.msra.mxu0 0.0
  %173 = vmatprep.subr.mxu0 0.0
  %174 = vmatpush1.msra.mxu0 0.0
  %175 = vmatprep.subr.mxu0 0.0
  %176 = vmatpush1.msra.mxu0 0.0
  %177 = vmatprep.subr.mxu0 0.0
  %178 = vmatpush1.msra.mxu0 0.0
  %179 = vmatprep.subr.mxu0 0.0
  %180 = vmatpush1.msra.mxu0 0.0
  %181 = vmatprep.subr.mxu0 0.0
  %182 = vmatpush1.msra.mxu0 0.0
  %183 = vmatprep.subr.mxu0 0.0
  %184 = vmatpush1.msra.mxu0 0.0
  %185 = vmatprep.subr.mxu0 0.0
  %186 = vmatpush1.msra.mxu0 0.0
  %187 = vmatprep.subr.mxu0 0.0
  %188 = vmatpush1.msra.mxu0 0.0
  %189 = vmatprep.subr.mxu0 0.0
  %190 = vmatpush1.msra.mxu0 0.0
  %191 = vmatprep.subr.mxu0 0.0
  %192 = vmatpush1.msra.mxu0 0.0
  %193 = vmatprep.subr.mxu0 0.0
  %194 = vmatpush1.msra.mxu0 0.0
  %195 = vmatprep.mubr.f32.mxu0 0.0
  %196 = vmatmul.mubr.f32.gmra.mrb[0].mxu0 %v40
  %v197 = vpop.f32.mrb[0].mxu0
  %v198 = vadd.f32 %v129, %v197
  %v199 = vpop.f32.mrb[0].mxu0
  %200 = vmatprep.mubr.f32.mxu0 0.0
  %201 = vmatmul.mubr.f32.gmra.mrb[0].mxu0 %v43
  %v202 = vpop.f32.mrb[0].mxu0
  %v203 = vadd.f32 %v129, %v202
  %v204 = vpop.f32.mrb[0].mxu0
  %205 = vdwg.mxu0
  %v206 = vmax.f32 %v198, 0.0
  %v207 = vmax.f32 %v203, 0.0
  %v208 = vand.u32 2147483647, %v198
  %v209 = vand.u32 2147483647, %v203
  %v210 = vsub.f32 0.0, %v208
  %v211 = vsub.f32 0.0, %v209
  %v212 = vmul.f32 %v210, 1.442695
  %v213 = vpow.pop %v212
  %v214 = vmul.f32 %v211, 1.442695
  %v215 = vpow.pop %v214
  %v216 = vadd.f32 %v213, 1.0
  %v217 = vlog2.pop %v216
  %v218 = vmul.f32 %v217, 0.6931472
  %v219 = vmul.f32 -0.5, %v213
  %v220 = vadd.f32 %v219, 1.0
  %v221 = vmul.f32 %v220, %v213
  %v222 = vand.u32 2147483647, %v213
  %vm223 = vcmp.lt.f32.partialorder %v222, 0.0004427343
  %v224 = vsel %vm223, %v221, %v218
  %v225 = vadd.f32 %v215, 1.0
  %v226 = vlog2.pop %v225
  %v227 = vmul.f32 %v226, 0.6931472
  %v228 = vmul.f32 -0.5, %v215
  %v229 = vadd.f32 %v228, 1.0
  %v230 = vmul.f32 %v229, %v215
  %v231 = vand.u32 2147483647, %v215
  %vm232 = vcmp.lt.f32.partialorder %v231, 0.0004427343
  %v233 = vsel %vm232, %v230, %v227
  %v234 = vadd.f32 %v206, %v224
  %v235 = vadd.f32 %v207, %v233
  %v236 = vld [vmem:[%s5] sm:$0xff]
  %v237 = vld [vmem:[%s5 + $0x8] sm:$0xff]
  %v238 = vmul.f32 %v236, %v234
  %v239 = vmul.f32 %v237, %v235
  %v240 = vadd.f32 %v112, %v238
  %v241 = vadd.f32 %v117, %v239
  %v242 = vlaneseq
  %v243 = vand.u32 %v242, 127
  %vm244 = vcmask 31744
  %v245 = vsel %vm244, %v240, -inf
  %246 = vmax.xlane.f32.xlu0 %v245
  %v247 = vpop.xlane.xlu0 %246
  %v248 = vsel %vm244, %v241, -inf
  %249 = vmax.xlane.f32.xlu0 %v248
  %v250 = vpop.xlane.xlu0 %249
  %vm251 = vcmp.eq.f32.partialorder %v240, %v247
  %vm252 = vcmp.eq.f32.partialorder %v241, %v250
  %v253 = vsel %vm251, %v243, 4
  %v254 = vsel %vm252, %v243, 4
  %v255 = vsel %vm244, %v253, 2147483647
  %v256 = vand.u32 %v255, 65535
  %v257 = vshra.s32 %v255, 16
  %v258 = vcvt.s32.f32 %v256
  %v259 = vcvt.s32.f32 %v257
  %260 = vmin.xlane.f32.xlu0 %v259
  %v261 = vpop.xlane.xlu0 %260
  %vm262 = vcmp.eq.f32.partialorder %v259, %v261
  %v263 = vsel %vm262, %v258, inf
  %264 = vmin.xlane.f32.xlu0 %v263
  %v265 = vpop.xlane.xlu0 %264
  %v266 = vcvt.f32.s32 %v265
  %v267 = vcvt.f32.s32 %v261
  %v268 = vshll.u32 %v267, 16
  %v269 = vadd.s32 %v268, %v266
  %v270 = vsel %vm244, %v254, 2147483647
  %v271 = vand.u32 %v270, 65535
  %v272 = vshra.s32 %v270, 16
  %v273 = vcvt.s32.f32 %v271
  %v274 = vcvt.s32.f32 %v272
  %275 = vmin.xlane.f32.xlu0 %v274
  %v276 = vpop.xlane.xlu0 %275
  %vm277 = vcmp.eq.f32.partialorder %v274, %v276
  %v278 = vsel %vm277, %v273, inf
  %279 = vmin.xlane.f32.xlu0 %v278
  %v280 = vpop.xlane.xlu0 %279
  %v281 = vcvt.f32.s32 %v280
  %v282 = vcvt.f32.s32 %v276
  %v283 = vshll.u32 %v282, 16
  %v284 = vadd.s32 %v283, %v281
  %vm285 = vcmp.eq.s32.totalorder %v243, %v269
  %vm286 = vcmp.eq.s32.totalorder %v243, %v284
  %v287 = vsel %vm285, -inf, %v240
  %v288 = vsel %vm286, -inf, %v241
  %v289 = vsel %vm244, %v287, -inf
  %290 = vmax.xlane.f32.xlu0 %v289
  %v291 = vpop.xlane.xlu0 %290
  %v292 = vsel %vm244, %v288, -inf
  %293 = vmax.xlane.f32.xlu0 %v292
  %v294 = vpop.xlane.xlu0 %293
  %vm295 = vcmp.eq.f32.partialorder %v287, %v291
  %vm296 = vcmp.eq.f32.partialorder %v288, %v294
  %v297 = vsel %vm295, %v243, 4
  %v298 = vsel %vm296, %v243, 4
  %v299 = vsel %vm244, %v297, 2147483647
  %v300 = vand.u32 %v299, 65535
  %v301 = vshra.s32 %v299, 16
  %v302 = vcvt.s32.f32 %v300
  %v303 = vcvt.s32.f32 %v301
  %304 = vmin.xlane.f32.xlu0 %v303
  %v305 = vpop.xlane.xlu0 %304
  %vm306 = vcmp.eq.f32.partialorder %v303, %v305
  %v307 = vsel %vm306, %v302, inf
  %308 = vmin.xlane.f32.xlu0 %v307
  %v309 = vpop.xlane.xlu0 %308
  %v310 = vcvt.f32.s32 %v309
  %v311 = vcvt.f32.s32 %v305
  %v312 = vshll.u32 %v311, 16
  %v313 = vadd.s32 %v312, %v310
  %v314 = vsel %vm244, %v298, 2147483647
  %v315 = vand.u32 %v314, 65535
  %v316 = vshra.s32 %v314, 16
  %v317 = vcvt.s32.f32 %v315
  %v318 = vcvt.s32.f32 %v316
  %319 = vmin.xlane.f32.xlu0 %v318
  %v320 = vpop.xlane.xlu0 %319
  %vm321 = vcmp.eq.f32.partialorder %v318, %v320
  %v322 = vsel %vm321, %v317, inf
  %323 = vmin.xlane.f32.xlu0 %v322
  %v324 = vpop.xlane.xlu0 %323
  %v325 = vcvt.f32.s32 %v324
  %v326 = vcvt.f32.s32 %v320
  %v327 = vshll.u32 %v326, 16
  %v328 = vadd.s32 %v327, %v325
  %vm329 = vcmp.eq.s32.totalorder %v243, %v313
  %vm330 = vcmp.eq.s32.totalorder %v243, %v328
  %vm331 = vmor %vm285, %vm329
  %vm332 = vmor %vm286, %vm330
  %v333 = vsel %vm331, %v240, -inf
  %v334 = vsel %vm332, %v241, -inf
  %v335 = vsel %vm244, %v333, -inf
  %336 = vmax.xlane.f32.xlu0 %v335
  %v337 = vpop.xlane.xlu0 %336
  %v338 = vsel %vm244, %v334, -inf
  %339 = vmax.xlane.f32.xlu0 %v338
  %v340 = vpop.xlane.xlu0 %339
  %v341 = vsub.f32 %v240, %v337
  %v342 = vsub.f32 %v241, %v340
  %v343 = vmul.f32 %v341, 1.442695
  %v344 = vpow.pop %v343
  %v345 = vmul.f32 %v342, 1.442695
  %v346 = vpow.pop %v345
  %v347 = vsel %vm331, %v344, 0.0
  %v348 = vsel %vm332, %v346, 0.0
  %v349 = vsel %vm244, %v347, 0.0
  %350 = vadd.xlane.f32.xlu0 %v349
  %v351 = vpop.xlane.xlu0 %350
  %v352 = vsel %vm244, %v348, 0.0
  %353 = vadd.xlane.f32.xlu0 %v352
  %v354 = vpop.xlane.xlu0 %353
  %v355 = vrcp.pop %v351
  %v356 = vmul.f32 %v347, %v355
  %v357 = vrcp.pop %v354
  %v358 = vmul.f32 %v348, %v357
  %359 = vst.msk [vmem:[%s6] sm:$0xff] %vm244, %v356
  %360 = vst.msk [vmem:[%s6 + $0x8] sm:$0xff] %vm244, %v358
  %vm361 = vcmask 7168
  %362 = vst.msk [vmem:[%s7] sm:$0xff] %vm361, %v356
  %363 = vst.msk [vmem:[%s7 + $0x8] sm:$0xff] %vm361, %v358
  %366 = vrot.lane.b32.xlu0 %v356, 127
  %v367 = vpop.permute.xlu0 %366
  %368 = vrot.lane.b32.xlu0 %v358, 127
  %v369 = vpop.permute.xlu0 %368
  %s372 = scalar_lea.vmem %s7, 16
  %373 = vst.msk [vmem:[%s372] sm:$0xff] %vm361, %v367
  %374 = vst.msk [vmem:[%s372 + $0x8] sm:$0xff] %vm361, %v369
  %375 = vrot.lane.b32.xlu0 %v356, 126
  %v376 = vpop.permute.xlu0 %375
  %377 = vrot.lane.b32.xlu0 %v358, 126
  %v378 = vpop.permute.xlu0 %377
  %s381 = scalar_lea.vmem %s7, 32
  %382 = vst.msk [vmem:[%s381] sm:$0xff] %vm361, %v376
  %383 = vst.msk [vmem:[%s381 + $0x8] sm:$0xff] %vm361, %v378
  %384 = vrot.lane.b32.xlu0 %v356, 125
  %v385 = vpop.permute.xlu0 %384
  %386 = vrot.lane.b32.xlu0 %v358, 125
  %v387 = vpop.permute.xlu0 %386
  %s390 = scalar_lea.vmem %s7, 48
  %391 = vst.msk [vmem:[%s390] sm:$0xff] %vm361, %v385
  %392 = vst.msk [vmem:[%s390 + $0x8] sm:$0xff] %vm361, %v387
  // Predicated region
  $region26: #{tpu_custom_call.1} parent=0 // pred_check
    _
  $region27: #{tpu_custom_call.1} parent=0 // pred_check_branch
    %394 = sbr.rel (0) target = $region29
  $region28: #{tpu_custom_call.1} parent=0 // pred_region
    _
  $region29: #{tpu_custom_call.1} parent=0 // pred_fallthru
    _
  // Predicated region
  $region30: #{tpu_custom_call.1} parent=0 // pred_check
    _
  $region31: #{tpu_custom_call.1} parent=0 // pred_check_branch
    %396 = sbr.rel (0) target = $region33
  $region32: #{tpu_custom_call.1} parent=0 // pred_region
    _
  $region33: #{tpu_custom_call.1} parent=0 // pred_fallthru
    _
  // Predicated region
  $region34: #{tpu_custom_call.1} parent=0 // pred_check
    _
  $region35: #{tpu_custom_call.1} parent=0 // pred_check_branch
    %398 = sbr.rel (0) target = $region37
  $region36: #{tpu_custom_call.1} parent=0 // pred_region
    _
  $region37: #{tpu_custom_call.1} parent=0 // pred_fallthru
    _
  // Predicated region
  $region38: #{tpu_custom_call.1} parent=0 // pred_check
    _
  $region39: #{tpu_custom_call.1} parent=0 // pred_check_branch
    %400 = sbr.rel (0) target = $region41
  $region40: #{tpu_custom_call.1} parent=0 // pred_region
    _
  $region41: #{tpu_custom_call.1} parent=0 // pred_fallthru
    _

</llo_original>
